<compile_context>
chip_gen: v7x
topology: tpu7x:2x2x1
jax: 0.10.0
libtpu: 0.0.40
codegen_flags: <defaults>
</compile_context>

<pallas_src>
import functools

import jax
import jax.numpy as jnp
from jax import lax
from jax.experimental import pallas as pl
from jax.experimental.pallas import tpu as pltpu


def _round_up(a, b):
    return (a + b - 1) // b * b


def _one_hot(batch_col, g_pad):
    """batch_col: [chunk, 1] int32 (padded nodes carry -1 -> match no graph)."""
    chunk = batch_col.shape[0]
    gid = lax.broadcasted_iota(jnp.int32, (chunk, g_pad), 1)
    return (gid == batch_col).astype(jnp.float32)            # [chunk, G_pad]


_CONTRACT_NODE = (((0,), (0,)), ((), ()))                     # contract node axis
_CONTRACT_FEAT = (((1,), (1,)), ((), ()))                     # contract feature axis


# --------------------------------------------------------------------------- #
# Kernels
# --------------------------------------------------------------------------- #
def _att_pool_kernel(h_valid, use_ones_col, x_ref, b_ref, w_ref, out_ref,
                     acc_ref, *cnt_ref):
    """Two-phase streaming ATT pool. grid = (phase, node_chunk)."""
    phase = pl.program_id(0)
    i = pl.program_id(1)
    n_chunks = pl.num_programs(1)

    x = x_ref[...].astype(jnp.float32)                        # [chunk, H_pad]
    seg = _one_hot(b_ref[...], out_ref.shape[0])              # [chunk, G_pad]

    # ---- phase 0: per-graph feature sums (+ node counts) ---------------------
    @pl.when((phase == 0) & (i == 0))
    def _():
        acc_ref[...] = jnp.zeros_like(acc_ref)
        if not use_ones_col:
            cnt_ref[0][...] = jnp.zeros_like(cnt_ref[0])

    @pl.when(phase == 0)
    def _():
        acc_ref[...] += lax.dot_general(seg, x, _CONTRACT_NODE,
                                        preferred_element_type=jnp.float32)
        if not use_ones_col:
            cnt_ref[0][...] += lax.dot_general(
                seg, jnp.ones((x.shape[0], 1), jnp.float32), _CONTRACT_NODE,
                preferred_element_type=jnp.float32)

    @pl.when((phase == 0) & (i == n_chunks - 1))
    def _():
        acc = acc_ref[...]
        # Counts live in the padding column h_valid of acc (ones column of x),
        # or in the explicit cnt scratch when there is no padding column.
        cnt = acc[:, h_valid:h_valid + 1] if use_ones_col else cnt_ref[0][...]
        x_mean = acc * (1.0 / jnp.maximum(cnt, 1.0))
        # Reuse acc as storage for c = tanh(x_mean @ W), consumed in phase 1.
        acc_ref[...] = jnp.tanh(jnp.dot(x_mean, w_ref[...],
                                        preferred_element_type=jnp.float32))

    # ---- phase 1: per-node alpha + weighted global_add_pool ------------------
    @pl.when((phase == 1) & (i == 0))
    def _():
        out_ref[...] = jnp.zeros_like(out_ref)

    @pl.when(phase == 1)
    def _():
        c = acc_ref[...]                                      # [G_pad, H_pad]
        # scores[n, g] = <x[n, :], c[g, :]>   (transpose-free contraction)
        scores = lax.dot_general(x, c, _CONTRACT_FEAT,
                                 preferred_element_type=jnp.float32)
        alpha = jax.nn.sigmoid(jnp.sum(scores * seg, axis=1, keepdims=True))
        # Fold alpha into the one-hot ([chunk, G_pad]) instead of into x
        # ([chunk, H_pad]) -- mathematically identical, far less VPU work.
        out_ref[...] += lax.dot_general(seg * alpha, x, _CONTRACT_NODE,
                                        preferred_element_type=jnp.float32)


def _att_pool_fused_kernel(h_valid, use_ones_col, x_ref, b_ref, w_ref, out_ref):
    """Single-pass ATT pool for VMEM-resident x (one HBM read of x)."""
    x = x_ref[...].astype(jnp.float32)                        # [N_pad, H_pad]
    seg = _one_hot(b_ref[...], out_ref.shape[0])              # [N_pad, G_pad]

    acc = lax.dot_general(seg, x, _CONTRACT_NODE,
                          preferred_element_type=jnp.float32) # [G_pad, H_pad]
    if use_ones_col:
        cnt = acc[:, h_valid:h_valid + 1]
    else:
        cnt = lax.dot_general(seg, jnp.ones((x.shape[0], 1), jnp.float32),
                              _CONTRACT_NODE,
                              preferred_element_type=jnp.float32)
    x_mean = acc * (1.0 / jnp.maximum(cnt, 1.0))
    c = jnp.tanh(jnp.dot(x_mean, w_ref[...],
                         preferred_element_type=jnp.float32))

    scores = lax.dot_general(x, c, _CONTRACT_FEAT,
                             preferred_element_type=jnp.float32)
    alpha = jax.nn.sigmoid(jnp.sum(scores * seg, axis=1, keepdims=True))
    out_ref[...] = lax.dot_general(seg * alpha, x, _CONTRACT_NODE,
                                   preferred_element_type=jnp.float32)


def _avg_pool_kernel(h_valid, use_ones_col, x_ref, b_ref, out_ref, *cnt_ref):
    i = pl.program_id(0)
    n_chunks = pl.num_programs(0)

    x = x_ref[...].astype(jnp.float32)
    seg = _one_hot(b_ref[...], out_ref.shape[0])

    @pl.when(i == 0)
    def _():
        out_ref[...] = jnp.zeros_like(out_ref)
        if not use_ones_col:
            cnt_ref[0][...] = jnp.zeros_like(cnt_ref[0])

    out_ref[...] += lax.dot_general(seg, x, _CONTRACT_NODE,
                                    preferred_element_type=jnp.float32)
    if not use_ones_col:
        cnt_ref[0][...] += lax.dot_general(
            seg, jnp.ones((x.shape[0], 1), jnp.float32), _CONTRACT_NODE,
            preferred_element_type=jnp.float32)

    @pl.when(i == n_chunks - 1)
    def _():
        out = out_ref[...]
        cnt = out[:, h_valid:h_valid + 1] if use_ones_col else cnt_ref[0][...]
        out_ref[...] = out * (1.0 / jnp.maximum(cnt, 1.0))


# --------------------------------------------------------------------------- #
# Wrapper
# --------------------------------------------------------------------------- #
def _choose_chunk(N, H_pad, G_pad, xbytes, node_chunk):
    """Pick the node-chunk size: as large as the VMEM budget allows, but with
    at most <128 rows of padding per chunk (avoid wasted DMA / matmul work)."""
    fixed = 2 * H_pad * H_pad * 4 + 3 * G_pad * H_pad * 4     # W (x2) + out + acc
    x_budget = max(4 << 20, (28 << 20) - fixed)               # double-buffered x
    cap = max(128, (x_budget // (2 * H_pad * xbytes)) // 128 * 128)
    target = max(128, min(node_chunk, cap))
    n_chunks = max(1, -(-N // target))
    chunk = _round_up(-(-N // n_chunks), 128)
    return chunk, n_chunks


@functools.partial(jax.jit,
                   static_argnames=("num_graphs", "mode", "node_chunk",
                                    "force_stream"))
def global_pool(x, batch, W, num_graphs, mode="ATT", node_chunk=1024,
                force_stream=False):
    """x: [N, nhid] f32/bf16, batch: [N] int graph id per node, W: [nhid, nhid].

    batch values outside [0, num_graphs) are silently dropped by the one-hot.
    Empty graphs produce zero rows (guarded divide), unlike PyTorch's NaN.
    """
    N, H = x.shape
    if x.dtype not in (jnp.float32, jnp.bfloat16):
        x = x.astype(jnp.float32)
    xbytes = x.dtype.itemsize

    H_pad = _round_up(H, 128)                 # lane-dense feature axis
    G_pad = _round_up(num_graphs, 8)          # sublane-aligned graph axis
    use_ones_col = H_pad > H                  # counts ride the padding column

    sub = 8 if xbytes == 4 else 16            # sublane packing of x dtype
    if mode == "ATT" and not force_stream:
        N_fused = _round_up(max(N, sub), sub)
        fused = (N_fused * H_pad * xbytes <= (8 << 20)
                 and N_fused * G_pad * 4 <= (4 << 20))
    else:
        fused = False

    if fused:
        N_pad = _round_up(max(N, sub), sub)
        chunk, n_chunks = N_pad, 1
    else:
        chunk, n_chunks = _choose_chunk(N, H_pad, G_pad, xbytes, node_chunk)
        N_pad = chunk * n_chunks

    # ---- pad / augment x only when necessary (no extra HBM pass otherwise) --
    if (N_pad != N) or (H_pad != H):
        x_p = jnp.pad(x, ((0, N_pad - N), (0, H_pad - H)))
        if use_ones_col:
            x_p = x_p.at[:, H].set(1.0)       # ones column -> free node counts
    else:
        x_p = x

    batch = batch.astype(jnp.int32)
    if N_pad != N:
        b_col = jnp.pad(batch, (0, N_pad - N),
                        constant_values=-1).reshape(N_pad, 1)
    else:
        b_col = batch.reshape(N_pad, 1)

    out_shape = jax.ShapeDtypeStruct((G_pad, H_pad), jnp.float32)

    if mode == "ATT":
        W_p = jnp.pad(W.astype(jnp.float32), ((0, H_pad - H), (0, H_pad - H)))
        cost = pl.CostEstimate(
            flops=2 * (3 * G_pad * N_pad * H_pad + G_pad * H_pad * H_pad),
            transcendentals=G_pad * H_pad + 2 * N_pad,
            bytes_accessed=(1 if fused else 2) * N_pad * H_pad * xbytes
                           + 4 * (2 * N_pad + H_pad * H_pad + G_pad * H_pad))

        if fused:
            vmem_limit = int(min(
                64 << 20,
                N_pad * H_pad * xbytes            # x resident (one block)
                + N_pad * H_pad * 4               # in-kernel f32 copy
                + 3 * N_pad * (G_pad + 2) * 4     # one-hot / scores temps
                + 2 * H_pad * H_pad * 4           # W (double-buffered)
                + 2 * G_pad * H_pad * 4           # output
                + (8 << 20)))
            out = pl.pallas_call(
                functools.partial(_att_pool_fused_kernel, H, use_ones_col),
                out_shape=out_shape,
                grid_spec=pltpu.PrefetchScalarGridSpec(
                    num_scalar_prefetch=0,
                    grid=(1,),
                    in_specs=[
                        pl.BlockSpec((N_pad, H_pad), lambda i: (0, 0)),
                        pl.BlockSpec((N_pad, 1), lambda i: (0, 0)),
                        pl.BlockSpec((H_pad, H_pad), lambda i: (0, 0)),
                    ],
                    out_specs=pl.BlockSpec((G_pad, H_pad), lambda i: (0, 0))),
                compiler_params=pltpu.CompilerParams(
                    dimension_semantics=("arbitrary",),
                    vmem_limit_bytes=vmem_limit),
                cost_estimate=cost,
            )(x_p, b_col, W_p)
        else:
            vmem_limit = int(min(
                64 << 20,
                2 * chunk * H_pad * xbytes        # x (double-buffered stream)
                + chunk * H_pad * 4               # in-kernel f32 chunk copy
                + 2 * chunk * (G_pad + 2) * 4     # one-hot / scores temps
                + 2 * H_pad * H_pad * 4           # W (double-buffered)
                + 3 * G_pad * H_pad * 4           # out + acc scratch
                + (8 << 20)))
            scratch = [pltpu.VMEM((G_pad, H_pad), jnp.float32)]
            if not use_ones_col:
                scratch.append(pltpu.VMEM((G_pad, 1), jnp.float32))
            out = pl.pallas_call(
                functools.partial(_att_pool_kernel, H, use_ones_col),
                out_shape=out_shape,
                grid_spec=pltpu.PrefetchScalarGridSpec(
                    num_scalar_prefetch=0,
                    grid=(2, n_chunks),           # (phase, node-chunk)
                    in_specs=[
                        pl.BlockSpec((chunk, H_pad), lambda p, i: (i, 0)),
                        pl.BlockSpec((chunk, 1), lambda p, i: (i, 0)),
                        pl.BlockSpec((H_pad, H_pad), lambda p, i: (0, 0)),
                    ],
                    out_specs=pl.BlockSpec((G_pad, H_pad), lambda p, i: (0, 0)),
                    scratch_shapes=scratch),
                compiler_params=pltpu.CompilerParams(
                    dimension_semantics=("arbitrary", "arbitrary"),
                    vmem_limit_bytes=vmem_limit),
                cost_estimate=cost,
            )(x_p, b_col, W_p)

    elif mode == "AVG":
        vmem_limit = int(min(
            64 << 20,
            2 * chunk * H_pad * xbytes
            + chunk * H_pad * 4
            + 2 * chunk * (G_pad + 2) * 4
            + 3 * G_pad * H_pad * 4
            + (8 << 20)))
        cost = pl.CostEstimate(
            flops=2 * G_pad * N_pad * H_pad,
            transcendentals=0,
            bytes_accessed=N_pad * H_pad * xbytes
                           + 4 * (N_pad + G_pad * H_pad))
        scratch = []
        if not use_ones_col:
            scratch.append(pltpu.VMEM((G_pad, 1), jnp.float32))
        out = pl.pallas_call(
            functools.partial(_avg_pool_kernel, H, use_ones_col),
            out_shape=out_shape,
            grid_spec=pltpu.PrefetchScalarGridSpec(
                num_scalar_prefetch=0,
                grid=(n_chunks,),
                in_specs=[
                    pl.BlockSpec((chunk, H_pad), lambda i: (i, 0)),
                    pl.BlockSpec((chunk, 1), lambda i: (i, 0)),
                ],
                out_specs=pl.BlockSpec((G_pad, H_pad), lambda i: (0, 0)),
                scratch_shapes=scratch),
            compiler_params=pltpu.CompilerParams(
                dimension_semantics=("arbitrary",),
                vmem_limit_bytes=vmem_limit),
            cost_estimate=cost,
        )(x_p, b_col)
    else:
        raise ValueError(f"unknown GLOBAL_POOL mode: {mode}")

    return out[:num_graphs, :H]


# --------------------------------------------------------------------------- #
# Reference + test
# --------------------------------------------------------------------------- #
def _reference_att(x, batch, W, num_graphs):
    """Pure-JAX reference mirroring the PyTorch forward."""
    seg_sum = jax.ops.segment_sum(x, batch, num_segments=num_graphs)
    counts = jax.ops.segment_sum(jnp.ones((x.shape[0], 1), x.dtype), batch,
                                 num_segments=num_graphs)
    x_mean = seg_sum / counts
    c = jnp.tanh(x_mean @ W)
    c_node = c[batch]
    alpha = jax.nn.sigmoid(jnp.sum(x * c_node, axis=1, keepdims=True))
    return jax.ops.segment_sum(x * alpha, batch, num_segments=num_graphs)


if __name__ == "__main__":
    key = jax.random.PRNGKey(0)
    kx, kw = jax.random.split(key)

    nhid = 32          # hidden feature size
    num_graphs = 2     # graphs in the batch
    sizes = (7, 9)     # uneven nodes per graph (c_size)
    N = sum(sizes)     # total nodes = 16

    # deterministic parameter init (cfg['INIT'] == 'NORMAL': standard normal)
    W = jax.random.normal(kw, (nhid, nhid), dtype=jnp.float32)
    x = jax.random.normal(kx, (N, nhid), dtype=jnp.float32)
    batch = jnp.concatenate([jnp.full((s,), g, jnp.int32)
                             for g, s in enumerate(sizes)])

    # fused (single-pass) ATT path
    out_att = global_pool(x, batch, W, num_graphs=num_graphs, mode="ATT")
    out_att = jax.block_until_ready(out_att)
    # streaming (two-phase) ATT path, forced for coverage
    out_att_s = global_pool(x, batch, W, num_graphs=num_graphs, mode="ATT",
                            force_stream=True)
    out_att_s = jax.block_until_ready(out_att_s)
    # AVG path
    out_avg = global_pool(x, batch, W, num_graphs=num_graphs, mode="AVG")
    out_avg = jax.block_until_ready(out_avg)

    # numerical checks vs. pure-JAX references
    ref_att = _reference_att(x, batch, W, num_graphs)
    counts = jax.ops.segment_sum(jnp.ones((N, 1), jnp.float32), batch,
                                 num_segments=num_graphs)
    ref_avg = jax.ops.segment_sum(x, batch, num_segments=num_graphs) / counts

    assert out_att.shape == (num_graphs, nhid)
    assert out_att_s.shape == (num_graphs, nhid)
    assert out_avg.shape == (num_graphs, nhid)
    assert jnp.allclose(out_att, ref_att, atol=1e-4, rtol=1e-4), "ATT mismatch"
    assert jnp.allclose(out_att_s, ref_att, atol=1e-4, rtol=1e-4), \
        "ATT (stream) mismatch"
    assert jnp.allclose(out_avg, ref_avg, atol=1e-4, rtol=1e-4), "AVG mismatch"

    print("KERNEL_OK")
</pallas_src>

<mosaic_0001>
module attributes {stable_mosaic.version = 11 : i64} {
  func.func @_att_pool_fused_kernel(%arg0: i32, %arg1: memref<16x128xf32, #tpu.memory_space<vmem>>, %arg2: memref<16x1xi32, #tpu.memory_space<vmem>>, %arg3: memref<128x128xf32, #tpu.memory_space<vmem>>, %arg4: memref<8x128xf32, #tpu.memory_space<vmem>>) attributes {dimension_semantics = [#tpu.dimension_semantics<arbitrary>], iteration_bounds = array<i64: 1>, scalar_prefetch = 0 : i64, scratch_operands = 0 : i64, tpu.core_type = #tpu.core_type<tc>, window_params = [{pipeline_mode = #tpu.pipeline_mode<synchronous>, transform_indices = @transform_0, window_bounds = array<i64: 16, 128>}, {pipeline_mode = #tpu.pipeline_mode<synchronous>, transform_indices = @transform_1, window_bounds = array<i64: 16, 1>}, {pipeline_mode = #tpu.pipeline_mode<synchronous>, transform_indices = @transform_2, window_bounds = array<i64: 128, 128>}, {pipeline_mode = #tpu.pipeline_mode<synchronous>, transform_indices = @transform_3, window_bounds = array<i64: 8, 128>}]} {
    %c0 = arith.constant 0 : index
    %c0_0 = arith.constant 0 : index
    %0 = vector.load %arg1[%c0, %c0_0] : memref<16x128xf32, #tpu.memory_space<vmem>>, vector<16x128xf32>
    %c0_1 = arith.constant 0 : index
    %c0_2 = arith.constant 0 : index
    %1 = vector.load %arg2[%c0_1, %c0_2] : memref<16x1xi32, #tpu.memory_space<vmem>>, vector<16x1xi32>
    %2 = tpu.iota {dimensions = array<i32: 1>} : vector<16x8xi32>
    %3 = vector.broadcast %1 : vector<16x1xi32> to vector<16x8xi32>
    %4 = arith.cmpi eq, %2, %3 : vector<16x8xi32>
    %5 = arith.extui %4 : vector<16x8xi1> to vector<16x8xi32>
    %6 = arith.sitofp %5 : vector<16x8xi32> to vector<16x8xf32>
    %cst = arith.constant dense<0.000000e+00> : vector<8x128xf32>
    %7 = tpu.matmul %6, %0, %cst {dimension_numbers = #tpu.dot_dimension_numbers<[0], [0], [1], [1], [0, 1, 1, 1], [], []>} : vector<16x8xf32>, vector<16x128xf32>, vector<8x128xf32> -> vector<8x128xf32>
    %8 = vector.extract_strided_slice %7 {offsets = [0, 32], sizes = [8, 1], strides = [1, 1]} : vector<8x128xf32> to vector<8x1xf32>
    %cst_3 = arith.constant 1.000000e+00 : f32
    %9 = vector.broadcast %cst_3 : f32 to vector<8x1xf32>
    %10 = arith.maximumf %8, %9 : vector<8x1xf32>
    %cst_4 = arith.constant 1.000000e+00 : f32
    %11 = vector.broadcast %cst_4 : f32 to vector<8x1xf32>
    %12 = arith.divf %11, %10 : vector<8x1xf32>
    %13 = vector.broadcast %12 : vector<8x1xf32> to vector<8x128xf32>
    %14 = arith.mulf %7, %13 : vector<8x128xf32>
    %c0_5 = arith.constant 0 : index
    %c0_6 = arith.constant 0 : index
    %15 = vector.load %arg3[%c0_5, %c0_6] : memref<128x128xf32, #tpu.memory_space<vmem>>, vector<128x128xf32>
    %cst_7 = arith.constant dense<0.000000e+00> : vector<8x128xf32>
    %16 = tpu.matmul %14, %15, %cst_7 {dimension_numbers = #tpu.dot_dimension_numbers<[1], [0], [0], [1], [0, 0, 1, 1], [], []>} : vector<8x128xf32>, vector<128x128xf32>, vector<8x128xf32> -> vector<8x128xf32>
    %17 = math.tanh %16 : vector<8x128xf32>
    %cst_8 = arith.constant dense<0.000000e+00> : vector<16x8xf32>
    %18 = tpu.matmul %0, %17, %cst_8 {dimension_numbers = #tpu.dot_dimension_numbers<[1], [1], [0], [0], [0, 0, 1, 0], [], []>} : vector<16x128xf32>, vector<8x128xf32>, vector<16x8xf32> -> vector<16x8xf32>
    %19 = arith.mulf %18, %6 : vector<16x8xf32>
    %cst_9 = arith.constant dense<0.000000e+00> : vector<16xf32>
    %20 = vector.multi_reduction <add>, %19, %cst_9 [1] : vector<16x8xf32> to vector<16xf32>
    %21 = vector.shape_cast %20 : vector<16xf32> to vector<16x1xf32>
    %22 = arith.negf %21 : vector<16x1xf32>
    %23 = math.exp %22 : vector<16x1xf32>
    %cst_10 = arith.constant 1.000000e+00 : f32
    %24 = vector.broadcast %cst_10 : f32 to vector<16x1xf32>
    %25 = arith.addf %24, %23 : vector<16x1xf32>
    %26 = arith.divf %24, %25 : vector<16x1xf32>
    %27 = vector.broadcast %26 : vector<16x1xf32> to vector<16x8xf32>
    %28 = arith.mulf %6, %27 : vector<16x8xf32>
    %cst_11 = arith.constant dense<0.000000e+00> : vector<8x128xf32>
    %29 = tpu.matmul %28, %0, %cst_11 {dimension_numbers = #tpu.dot_dimension_numbers<[0], [0], [1], [1], [0, 1, 1, 1], [], []>} : vector<16x8xf32>, vector<16x128xf32>, vector<8x128xf32> -> vector<8x128xf32>
    %c0_12 = arith.constant 0 : index
    %c0_13 = arith.constant 0 : index
    %30 = vector.load %arg4[%c0_12, %c0_13] : memref<8x128xf32, #tpu.memory_space<vmem>>, vector<8x128xf32>
    tpu.vector_store %arg4[%c0_12, %c0_13], %29 {strides = array<i32>} : memref<8x128xf32, #tpu.memory_space<vmem>>, vector<8x128xf32>,
    return
  }
  func.func @transform_0(%arg0: i32) -> (i32, i32) {
    %c0_i32 = arith.constant 0 : i32
    %c0_i32_0 = arith.constant 0 : i32
    %c0_i32_1 = arith.constant 0 : i32
    return %c0_i32, %c0_i32_0 : i32, i32
  }
  func.func @transform_1(%arg0: i32) -> (i32, i32) {
    %c0_i32 = arith.constant 0 : i32
    %c0_i32_0 = arith.constant 0 : i32
    %c0_i32_1 = arith.constant 0 : i32
    return %c0_i32, %c0_i32_0 : i32, i32
  }
  func.func @transform_2(%arg0: i32) -> (i32, i32) {
    %c0_i32 = arith.constant 0 : i32
    %c0_i32_0 = arith.constant 0 : i32
    %c0_i32_1 = arith.constant 0 : i32
    return %c0_i32, %c0_i32_0 : i32, i32
  }
  func.func @transform_3(%arg0: i32) -> (i32, i32) {
    %c0_i32 = arith.constant 0 : i32
    %c0_i32_0 = arith.constant 0 : i32
    %c0_i32_1 = arith.constant 0 : i32
    return %c0_i32, %c0_i32_0 : i32, i32
  }
}

</mosaic_0001>

<llo_original>
// kernel: global_pool.1
$region0: #{global_pool.1}
  #allocation0 [shape = 'u32[]', space=smem, size = 0x4, offset = 0x4, fixed_abs, tag = 'smem constant byte address 0x4 - core index']
  #allocation1 [shape = 'u32[144,128]{1,0:T(1,128)}', space=vmem, size = 0x12000, scoped, tag = 'internal scratch']
  %s0 = inlined_call_operand.vmem [shape: f32[16,128], index: 0, kind: input, shape index: {}]
  %s1 = inlined_call_operand.vmem [shape: s32[16,1], index: 1, kind: input, shape index: {}]
  %s2 = inlined_call_operand.vmem [shape: f32[128,128], index: 2, kind: input, shape index: {}]
  %s3 = inlined_call_operand.vmem [shape: f32[8,128], index: 3, kind: output, shape index: {}]
  %s4 = sld [smem:[#allocation0]]
  $region22: #{global_pool.1} parent=0
    _
  %s6 = ssub.s32 1, %s4
  %s7 = scalar_select 0, %s6, %s4
  // Predicated region
  $region2: #{global_pool.1} parent=0 // pred_check
    _
  $region3: #{global_pool.1} parent=0 // pred_check_branch
    %9 = sbr.rel (0) target = $region5
  $region4: #{global_pool.1} parent=0 // pred_region
    _
  $region5: #{global_pool.1} parent=0 // pred_fallthru
    _
  // Predicated region
  $region6: #{global_pool.1} parent=0 // pred_check
    _
  $region7: #{global_pool.1} parent=0 // pred_check_branch
    %11 = sbr.rel (0) target = $region9
  $region8: #{global_pool.1} parent=0 // pred_region
    _
  $region9: #{global_pool.1} parent=0 // pred_fallthru
    _
  // Predicated region
  $region10: #{global_pool.1} parent=0 // pred_check
    _
  $region11: #{global_pool.1} parent=0 // pred_check_branch
    %13 = sbr.rel (0) target = $region13
  $region12: #{global_pool.1} parent=0 // pred_region
    _
  $region13: #{global_pool.1} parent=0 // pred_fallthru
    _
  %v14 = vld [vmem:[%s0] sm:$0xff]
  %v15 = vld [vmem:[%s0 + $0x8] sm:$0xff]
  %v16 = vld [vmem:[%s1] sm:$0xff]
  %v17 = vld [vmem:[%s1 + $0x8] sm:$0xff]
  %v18 = vlaneseq
  %v19 = vand.u32 %v18, 127
  %20 = vset.pattern.permute.xlu0 0
  %21 = vperm.xlu0 %20, %v16
  %v22 = vpop.permute.xlu0 %21
  %23 = vset.pattern.permute.xlu0 0
  %24 = vperm.xlu0 %23, %v17
  %v25 = vpop.permute.xlu0 %24
  %vm26 = vcmp.eq.s32.totalorder %v19, %v22
  %vm27 = vcmp.eq.s32.totalorder %v19, %v25
  %v28 = vsel %vm26, 1, 0
  %v29 = vsel %vm27, 1, 0
  %v30 = vcvt.s32.f32 %v28
  %v31 = vcvt.s32.f32 %v29
  %32 = vxpose.xlu0.b32.start [1/16] %v30, 128
  %33 = vxpose.xlu0.b32.cont [2/16] %v31, 128
  %34 = vxpose.xlu0.b32.cont [3/16] 0.0, 128
  %35 = vxpose.xlu0.b32.cont [4/16] 0.0, 128
  %36 = vxpose.xlu0.b32.cont [5/16] 0.0, 128
  %37 = vxpose.xlu0.b32.cont [6/16] 0.0, 128
  %38 = vxpose.xlu0.b32.cont [7/16] 0.0, 128
  %39 = vxpose.xlu0.b32.cont [8/16] 0.0, 128
  %40 = vxpose.xlu0.b32.cont [9/16] 0.0, 128
  %41 = vxpose.xlu0.b32.cont [10/16] 0.0, 128
  %42 = vxpose.xlu0.b32.cont [11/16] 0.0, 128
  %43 = vxpose.xlu0.b32.cont [12/16] 0.0, 128
  %44 = vxpose.xlu0.b32.cont [13/16] 0.0, 128
  %45 = vxpose.xlu0.b32.cont [14/16] 0.0, 128
  %46 = vxpose.xlu0.b32.cont [15/16] 0.0, 128
  %47 = vxpose.xlu0.b32.end [16/16] 0.0, 128
  %v48 = vpop.trf.xlu0
  %v49 = vpop.trf.xlu0
  %v50 = vpop.trf.xlu0
  %v51 = vpop.trf.xlu0
  %v52 = vpop.trf.xlu0
  %v53 = vpop.trf.xlu0
  %v54 = vpop.trf.xlu0
  %v55 = vpop.trf.xlu0
  %v56 = vpop.trf.xlu0
  %v57 = vpop.trf.xlu0
  %v58 = vpop.trf.xlu0
  %v59 = vpop.trf.xlu0
  %v60 = vpop.trf.xlu0
  %v61 = vpop.trf.xlu0
  %v62 = vpop.trf.xlu0
  %v63 = vpop.trf.xlu0
  %vm64 = vcmask 130048
  %v66 = vsel %vm64, %v48, 0
  %68 = vmatprep.subr.mxu0 0.0
  %69 = vmatpush1.msra.mxu0 %v14
  %70 = vmatprep.subr.mxu0 0.0
  %71 = vmatpush1.msra.mxu0 %v15
  %72 = vmatprep.subr.mxu0 0.0
  %73 = vmatpush1.msra.mxu0 0.0
  %74 = vmatprep.subr.mxu0 0.0
  %75 = vmatpush1.msra.mxu0 0.0
  %76 = vmatprep.subr.mxu0 0.0
  %77 = vmatpush1.msra.mxu0 0.0
  %78 = vmatprep.subr.mxu0 0.0
  %79 = vmatpush1.msra.mxu0 0.0
  %80 = vmatprep.subr.mxu0 0.0
  %81 = vmatpush1.msra.mxu0 0.0
  %82 = vmatprep.subr.mxu0 0.0
  %83 = vmatpush1.msra.mxu0 0.0
  %84 = vmatprep.subr.mxu0 0.0
  %85 = vmatpush1.msra.mxu0 0.0
  %86 = vmatprep.subr.mxu0 0.0
  %87 = vmatpush1.msra.mxu0 0.0
  %88 = vmatprep.subr.mxu0 0.0
  %89 = vmatpush1.msra.mxu0 0.0
  %90 = vmatprep.subr.mxu0 0.0
  %91 = vmatpush1.msra.mxu0 0.0
  %92 = vmatprep.subr.mxu0 0.0
  %93 = vmatpush1.msra.mxu0 0.0
  %94 = vmatprep.subr.mxu0 0.0
  %95 = vmatpush1.msra.mxu0 0.0
  %96 = vmatprep.subr.mxu0 0.0
  %97 = vmatpush1.msra.mxu0 0.0
  %98 = vmatprep.subr.mxu0 0.0
  %99 = vmatpush1.msra.mxu0 0.0
  %100 = vmatprep.subr.mxu0 0.0
  %101 = vmatpush1.msra.mxu0 0.0
  %102 = vmatprep.subr.mxu0 0.0
  %103 = vmatpush1.msra.mxu0 0.0
  %104 = vmatprep.subr.mxu0 0.0
  %105 = vmatpush1.msra.mxu0 0.0
  %106 = vmatprep.subr.mxu0 0.0
  %107 = vmatpush1.msra.mxu0 0.0
  %108 = vmatprep.subr.mxu0 0.0
  %109 = vmatpush1.msra.mxu0 0.0
  %110 = vmatprep.subr.mxu0 0.0
  %111 = vmatpush1.msra.mxu0 0.0
  %112 = vmatprep.subr.mxu0 0.0
  %113 = vmatpush1.msra.mxu0 0.0
  %114 = vmatprep.subr.mxu0 0.0
  %115 = vmatpush1.msra.mxu0 0.0
  %116 = vmatprep.subr.mxu0 0.0
  %117 = vmatpush1.msra.mxu0 0.0
  %118 = vmatprep.subr.mxu0 0.0
  %119 = vmatpush1.msra.mxu0 0.0
  %120 = vmatprep.subr.mxu0 0.0
  %121 = vmatpush1.msra.mxu0 0.0
  %122 = vmatprep.subr.mxu0 0.0
  %123 = vmatpush1.msra.mxu0 0.0
  %124 = vmatprep.subr.mxu0 0.0
  %125 = vmatpush1.msra.mxu0 0.0
  %126 = vmatprep.subr.mxu0 0.0
  %127 = vmatpush1.msra.mxu0 0.0
  %128 = vmatprep.subr.mxu0 0.0
  %129 = vmatpush1.msra.mxu0 0.0
  %130 = vmatprep.subr.mxu0 0.0
  %131 = vmatpush1.msra.mxu0 0.0
  %132 = vmatprep.mubr.f32.mxu0 0.0
  %133 = vmatmul.mubr.f32.gmra.mrb[0].mxu0 %v66
  %v134 = vpop.f32.mrb[0].mxu0
  %v135 = vadd.f32 0.0, %v134
  %v136 = vpop.f32.mrb[0].mxu0
  %137 = vdwg.mxu0
  %v138 = vmax.f32 %v135, 1.0
  %v139 = vrcp.pop %v138
  %v140 = vmul.f32 1.0, %v139
  %142 = vset.pattern.permute.xlu0 32
  %143 = vperm.xlu0 %142, %v140
  %v144 = vpop.permute.xlu0 %143
  %v146 = vmul.f32 %v135, %v144
  %v147 = vld [vmem:[%s2] sm:$0xff]
  %v148 = vld [vmem:[%s2 + $0x8] sm:$0xff]
  %v149 = vld [vmem:[%s2 + $0x10] sm:$0xff]
  %v150 = vld [vmem:[%s2 + $0x18] sm:$0xff]
  %v151 = vld [vmem:[%s2 + $0x20] sm:$0xff]
  %v152 = vld [vmem:[%s2 + $0x28] sm:$0xff]
  %v153 = vld [vmem:[%s2 + $0x30] sm:$0xff]
  %v154 = vld [vmem:[%s2 + $0x38] sm:$0xff]
  %v155 = vld [vmem:[%s2 + $0x40] sm:$0xff]
  %v156 = vld [vmem:[%s2 + $0x48] sm:$0xff]
  %v157 = vld [vmem:[%s2 + $0x50] sm:$0xff]
  %v158 = vld [vmem:[%s2 + $0x58] sm:$0xff]
  %v159 = vld [vmem:[%s2 + $0x60] sm:$0xff]
  %v160 = vld [vmem:[%s2 + $0x68] sm:$0xff]
  %v161 = vld [vmem:[%s2 + $0x70] sm:$0xff]
  %v162 = vld [vmem:[%s2 + $0x78] sm:$0xff]
  %163 = vmatprep.subr.mxu0 0.0
  %164 = vmatpush1.msra.mxu0 %v147
  %165 = vmatprep.subr.mxu0 0.0
  %166 = vmatpush1.msra.mxu0 %v148
  %167 = vmatprep.subr.mxu0 0.0
  %168 = vmatpush1.msra.mxu0 %v149
  %169 = vmatprep.subr.mxu0 0.0
  %170 = vmatpush1.msra.mxu0 %v150
  %171 = vmatprep.subr.mxu0 0.0
  %172 = vmatpush1.msra.mxu0 %v151
  %173 = vmatprep.subr.mxu0 0.0
  %174 = vmatpush1.msra.mxu0 %v152
  %175 = vmatprep.subr.mxu0 0.0
  %176 = vmatpush1.msra.mxu0 %v153
  %177 = vmatprep.subr.mxu0 0.0
  %178 = vmatpush1.msra.mxu0 %v154
  %179 = vmatprep.subr.mxu0 0.0
  %180 = vmatpush1.msra.mxu0 %v155
  %181 = vmatprep.subr.mxu0 0.0
  %182 = vmatpush1.msra.mxu0 %v156
  %183 = vmatprep.subr.mxu0 0.0
  %184 = vmatpush1.msra.mxu0 %v157
  %185 = vmatprep.subr.mxu0 0.0
  %186 = vmatpush1.msra.mxu0 %v158
  %187 = vmatprep.subr.mxu0 0.0
  %188 = vmatpush1.msra.mxu0 %v159
  %189 = vmatprep.subr.mxu0 0.0
  %190 = vmatpush1.msra.mxu0 %v160
  %191 = vmatprep.subr.mxu0 0.0
  %192 = vmatpush1.msra.mxu0 %v161
  %193 = vmatprep.subr.mxu0 0.0
  %194 = vmatpush1.msra.mxu0 %v162
  %195 = vmatprep.subr.mxu0 0.0
  %196 = vmatpush1.msra.mxu0 0.0
  %197 = vmatprep.subr.mxu0 0.0
  %198 = vmatpush1.msra.mxu0 0.0
  %199 = vmatprep.subr.mxu0 0.0
  %200 = vmatpush1.msra.mxu0 0.0
  %201 = vmatprep.subr.mxu0 0.0
  %202 = vmatpush1.msra.mxu0 0.0
  %203 = vmatprep.subr.mxu0 0.0
  %204 = vmatpush1.msra.mxu0 0.0
  %205 = vmatprep.subr.mxu0 0.0
  %206 = vmatpush1.msra.mxu0 0.0
  %207 = vmatprep.subr.mxu0 0.0
  %208 = vmatpush1.msra.mxu0 0.0
  %209 = vmatprep.subr.mxu0 0.0
  %210 = vmatpush1.msra.mxu0 0.0
  %211 = vmatprep.subr.mxu0 0.0
  %212 = vmatpush1.msra.mxu0 0.0
  %213 = vmatprep.subr.mxu0 0.0
  %214 = vmatpush1.msra.mxu0 0.0
  %215 = vmatprep.subr.mxu0 0.0
  %216 = vmatpush1.msra.mxu0 0.0
  %217 = vmatprep.subr.mxu0 0.0
  %218 = vmatpush1.msra.mxu0 0.0
  %219 = vmatprep.subr.mxu0 0.0
  %220 = vmatpush1.msra.mxu0 0.0
  %221 = vmatprep.subr.mxu0 0.0
  %222 = vmatpush1.msra.mxu0 0.0
  %223 = vmatprep.subr.mxu0 0.0
  %224 = vmatpush1.msra.mxu0 0.0
  %225 = vmatprep.subr.mxu0 0.0
  %226 = vmatpush1.msra.mxu0 0.0
  %227 = vmatprep.mubr.f32.mxu0 0.0
  %228 = vmatmul.mubr.f32.gmra.mrb[0].mxu0 %v146
  %v229 = vpop.f32.mrb[0].mxu0
  %v230 = vadd.f32 0.0, %v229
  %v231 = vpop.f32.mrb[0].mxu0
  %232 = vdwg.mxu0
  %v233 = vtanh.pop %v230
  %234 = vmatprep.subr.mxu0 0.0
  %235 = vmatpush1.xpose.msra.mxu0 %v233
  %236 = vmatprep.subr.mxu0 0.0
  %237 = vmatpush1.xpose.msra.mxu0 0.0
  %238 = vmatprep.subr.mxu0 0.0
  %239 = vmatpush1.xpose.msra.mxu0 0.0
  %240 = vmatprep.subr.mxu0 0.0
  %241 = vmatpush1.xpose.msra.mxu0 0.0
  %242 = vmatprep.subr.mxu0 0.0
  %243 = vmatpush1.xpose.msra.mxu0 0.0
  %244 = vmatprep.subr.mxu0 0.0
  %245 = vmatpush1.xpose.msra.mxu0 0.0
  %246 = vmatprep.subr.mxu0 0.0
  %247 = vmatpush1.xpose.msra.mxu0 0.0
  %248 = vmatprep.subr.mxu0 0.0
  %249 = vmatpush1.xpose.msra.mxu0 0.0
  %250 = vmatprep.subr.mxu0 0.0
  %251 = vmatpush1.xpose.msra.mxu0 0.0
  %252 = vmatprep.subr.mxu0 0.0
  %253 = vmatpush1.xpose.msra.mxu0 0.0
  %254 = vmatprep.subr.mxu0 0.0
  %255 = vmatpush1.xpose.msra.mxu0 0.0
  %256 = vmatprep.subr.mxu0 0.0
  %257 = vmatpush1.xpose.msra.mxu0 0.0
  %258 = vmatprep.subr.mxu0 0.0
  %259 = vmatpush1.xpose.msra.mxu0 0.0
  %260 = vmatprep.subr.mxu0 0.0
  %261 = vmatpush1.xpose.msra.mxu0 0.0
  %262 = vmatprep.subr.mxu0 0.0
  %263 = vmatpush1.xpose.msra.mxu0 0.0
  %264 = vmatprep.subr.mxu0 0.0
  %265 = vmatpush1.xpose.msra.mxu0 0.0
  %266 = vmatprep.subr.mxu0 0.0
  %267 = vmatpush1.xpose.msra.mxu0 0.0
  %268 = vmatprep.subr.mxu0 0.0
  %269 = vmatpush1.xpose.msra.mxu0 0.0
  %270 = vmatprep.subr.mxu0 0.0
  %271 = vmatpush1.xpose.msra.mxu0 0.0
  %272 = vmatprep.subr.mxu0 0.0
  %273 = vmatpush1.xpose.msra.mxu0 0.0
  %274 = vmatprep.subr.mxu0 0.0
  %275 = vmatpush1.xpose.msra.mxu0 0.0
  %276 = vmatprep.subr.mxu0 0.0
  %277 = vmatpush1.xpose.msra.mxu0 0.0
  %278 = vmatprep.subr.mxu0 0.0
  %279 = vmatpush1.xpose.msra.mxu0 0.0
  %280 = vmatprep.subr.mxu0 0.0
  %281 = vmatpush1.xpose.msra.mxu0 0.0
  %282 = vmatprep.subr.mxu0 0.0
  %283 = vmatpush1.xpose.msra.mxu0 0.0
  %284 = vmatprep.subr.mxu0 0.0
  %285 = vmatpush1.xpose.msra.mxu0 0.0
  %286 = vmatprep.subr.mxu0 0.0
  %287 = vmatpush1.xpose.msra.mxu0 0.0
  %288 = vmatprep.subr.mxu0 0.0
  %289 = vmatpush1.xpose.msra.mxu0 0.0
  %290 = vmatprep.subr.mxu0 0.0
  %291 = vmatpush1.xpose.msra.mxu0 0.0
  %292 = vmatprep.subr.mxu0 0.0
  %293 = vmatpush1.xpose.msra.mxu0 0.0
  %294 = vmatprep.subr.mxu0 0.0
  %295 = vmatpush1.xpose.msra.mxu0 0.0
  %296 = vmatprep.subr.mxu0 0.0
  %297 = vmatpush1.xpose.msra.mxu0 0.0
  %298 = vmatprep.mubr.f32.mxu0 0.0
  %299 = vmatmul.mubr.f32.gmra.mrb[0].mxu0 %v14
  %v300 = vpop.f32.mrb[0].mxu0
  %v301 = vadd.f32 0.0, %v300
  %v302 = vpop.f32.mrb[0].mxu0
  %303 = vmatprep.mubr.f32.mxu0 0.0
  %304 = vmatmul.mubr.f32.gmra.mrb[0].mxu0 %v15
  %v305 = vpop.f32.mrb[0].mxu0
  %v306 = vadd.f32 0.0, %v305
  %v307 = vpop.f32.mrb[0].mxu0
  %308 = vdwg.mxu0
  %v309 = vmul.f32 %v301, %v30
  %v310 = vmul.f32 %v306, %v31
  %vm311 = vcmask 64512
  %v312 = vsel %vm311, %v309, 0.0
  %313 = vadd.xlane.f32.xlu0 %v312
  %v314 = vpop.xlane.xlu0 %313
  %v315 = vsel %vm311, %v310, 0.0
  %316 = vadd.xlane.f32.xlu0 %v315
  %v317 = vpop.xlane.xlu0 %316
  %v318 = vxor.u32 %v314, 2147483648
  %v319 = vxor.u32 %v317, 2147483648
  %v320 = vmul.f32 %v318, 1.442695
  %v321 = vpow.pop %v320
  %v322 = vmul.f32 %v319, 1.442695
  %v323 = vpow.pop %v322
  %v324 = vadd.f32 %v321, 1.0
  %v325 = vadd.f32 %v323, 1.0
  %v326 = vrcp.pop %v324
  %v327 = vmul.f32 1.0, %v326
  %v328 = vrcp.pop %v325
  %v329 = vmul.f32 1.0, %v328
  %v330 = vmul.f32 %v30, %v327
  %v331 = vmul.f32 %v31, %v329
  %332 = vxpose.xlu0.b32.start [1/16] %v330, 128
  %333 = vxpose.xlu0.b32.cont [2/16] %v331, 128
  %334 = vxpose.xlu0.b32.cont [3/16] 0.0, 128
  %335 = vxpose.xlu0.b32.cont [4/16] 0.0, 128
  %336 = vxpose.xlu0.b32.cont [5/16] 0.0, 128
  %337 = vxpose.xlu0.b32.cont [6/16] 0.0, 128
  %338 = vxpose.xlu0.b32.cont [7/16] 0.0, 128
  %339 = vxpose.xlu0.b32.cont [8/16] 0.0, 128
  %340 = vxpose.xlu0.b32.cont [9/16] 0.0, 128
  %341 = vxpose.xlu0.b32.cont [10/16] 0.0, 128
  %342 = vxpose.xlu0.b32.cont [11/16] 0.0, 128
  %343 = vxpose.xlu0.b32.cont [12/16] 0.0, 128
  %344 = vxpose.xlu0.b32.cont [13/16] 0.0, 128
  %345 = vxpose.xlu0.b32.cont [14/16] 0.0, 128
  %346 = vxpose.xlu0.b32.cont [15/16] 0.0, 128
  %347 = vxpose.xlu0.b32.end [16/16] 0.0, 128
  %v348 = vpop.trf.xlu0
  %v349 = vpop.trf.xlu0
  %v350 = vpop.trf.xlu0
  %v351 = vpop.trf.xlu0
  %v352 = vpop.trf.xlu0
  %v353 = vpop.trf.xlu0
  %v354 = vpop.trf.xlu0
  %v355 = vpop.trf.xlu0
  %v356 = vpop.trf.xlu0
  %v357 = vpop.trf.xlu0
  %v358 = vpop.trf.xlu0
  %v359 = vpop.trf.xlu0
  %v360 = vpop.trf.xlu0
  %v361 = vpop.trf.xlu0
  %v362 = vpop.trf.xlu0
  %v363 = vpop.trf.xlu0
  %v365 = vsel %vm64, %v348, 0
  %367 = vmatprep.subr.mxu0 0.0
  %368 = vmatpush1.msra.mxu0 %v14
  %369 = vmatprep.subr.mxu0 0.0
  %370 = vmatpush1.msra.mxu0 %v15
  %371 = vmatprep.subr.mxu0 0.0
  %372 = vmatpush1.msra.mxu0 0.0
  %373 = vmatprep.subr.mxu0 0.0
  %374 = vmatpush1.msra.mxu0 0.0
  %375 = vmatprep.subr.mxu0 0.0
  %376 = vmatpush1.msra.mxu0 0.0
  %377 = vmatprep.subr.mxu0 0.0
  %378 = vmatpush1.msra.mxu0 0.0
  %379 = vmatprep.subr.mxu0 0.0
  %380 = vmatpush1.msra.mxu0 0.0
  %381 = vmatprep.subr.mxu0 0.0
  %382 = vmatpush1.msra.mxu0 0.0
  %383 = vmatprep.subr.mxu0 0.0
  %384 = vmatpush1.msra.mxu0 0.0
  %385 = vmatprep.subr.mxu0 0.0
  %386 = vmatpush1.msra.mxu0 0.0
  %387 = vmatprep.subr.mxu0 0.0
  %388 = vmatpush1.msra.mxu0 0.0
  %389 = vmatprep.subr.mxu0 0.0
  %390 = vmatpush1.msra.mxu0 0.0
  %391 = vmatprep.subr.mxu0 0.0
  %392 = vmatpush1.msra.mxu0 0.0
  %393 = vmatprep.subr.mxu0 0.0
  %394 = vmatpush1.msra.mxu0 0.0
  %395 = vmatprep.subr.mxu0 0.0
  %396 = vmatpush1.msra.mxu0 0.0
  %397 = vmatprep.subr.mxu0 0.0
  %398 = vmatpush1.msra.mxu0 0.0
  %399 = vmatprep.subr.mxu0 0.0
  %400 = vmatpush1.msra.mxu0 0.0
  %401 = vmatprep.subr.mxu0 0.0
  %402 = vmatpush1.msra.mxu0 0.0
  %403 = vmatprep.subr.mxu0 0.0
  %404 = vmatpush1.msra.mxu0 0.0
  %405 = vmatprep.subr.mxu0 0.0
  %406 = vmatpush1.msra.mxu0 0.0
  %407 = vmatprep.subr.mxu0 0.0
  %408 = vmatpush1.msra.mxu0 0.0
  %409 = vmatprep.subr.mxu0 0.0
  %410 = vmatpush1.msra.mxu0 0.0
  %411 = vmatprep.subr.mxu0 0.0
  %412 = vmatpush1.msra.mxu0 0.0
  %413 = vmatprep.subr.mxu0 0.0
  %414 = vmatpush1.msra.mxu0 0.0
  %415 = vmatprep.subr.mxu0 0.0
  %416 = vmatpush1.msra.mxu0 0.0
  %417 = vmatprep.subr.mxu0 0.0
  %418 = vmatpush1.msra.mxu0 0.0
  %419 = vmatprep.subr.mxu0 0.0
  %420 = vmatpush1.msra.mxu0 0.0
  %421 = vmatprep.subr.mxu0 0.0
  %422 = vmatpush1.msra.mxu0 0.0
  %423 = vmatprep.subr.mxu0 0.0
  %424 = vmatpush1.msra.mxu0 0.0
  %425 = vmatprep.subr.mxu0 0.0
  %426 = vmatpush1.msra.mxu0 0.0
  %427 = vmatprep.subr.mxu0 0.0
  %428 = vmatpush1.msra.mxu0 0.0
  %429 = vmatprep.subr.mxu0 0.0
  %430 = vmatpush1.msra.mxu0 0.0
  %431 = vmatprep.mubr.f32.mxu0 0.0
  %432 = vmatmul.mubr.f32.gmra.mrb[0].mxu0 %v365
  %v433 = vpop.f32.mrb[0].mxu0
  %v434 = vadd.f32 0.0, %v433
  %v435 = vpop.f32.mrb[0].mxu0
  %436 = vdwg.mxu0
  %437 = vst [vmem:[%s3] sm:$0xff] %v434
  // Predicated region
  $region14: #{global_pool.1} parent=0 // pred_check
    _
  $region15: #{global_pool.1} parent=0 // pred_check_branch
    %439 = sbr.rel (0) target = $region17
  $region16: #{global_pool.1} parent=0 // pred_region
    _
  $region17: #{global_pool.1} parent=0 // pred_fallthru
    _
  // Predicated region
  $region18: #{global_pool.1} parent=0 // pred_check
    _
  $region19: #{global_pool.1} parent=0 // pred_check_branch
    %441 = sbr.rel (0) target = $region21
  $region20: #{global_pool.1} parent=0 // pred_region
    _
  $region21: #{global_pool.1} parent=0 // pred_fallthru
    _

</llo_original>
